<compile_context>
chip_gen: v5e
topology: v5e:2x2
jax: 0.10.0
libtpu: 0.0.40
codegen_flags: <defaults>
</compile_context>

<pallas_src>
import functools

import jax
import jax.numpy as jnp
from jax import lax
from jax.experimental import pallas as pl
from jax.experimental.pallas import tpu as pltpu

EPS = 1e-5
LANE = 128


def _round_up(x, m):
    return (x + m - 1) // m * m


# ----------------------------------------------------------------------------
# Kernel
# ----------------------------------------------------------------------------
def tabular_kernel(x_cat_ref, x_cont_ref,
                   w1_ref, b1_ref, w2_ref, b2_ref, w3_ref, b3_ref,
                   out_ref, *, vocab):
    tb = x_cat_ref.shape[0]
    n_cat = x_cat_ref.shape[1]
    n_cont = x_cont_ref.shape[1]
    lane = w1_ref.shape[0]                                       # 128

    # ---- build the (TB, 128) layer-1 input slab ------------------------------
    #   lanes [0, vocab)            : multi-hot one-hot of offset-adjusted
    #                                 categorical indices (block-diagonal vocab,
    #                                 per-column row ranges are disjoint)
    #   lanes [vocab, vocab+n_cont) : raw continuous features (BN scale folded
    #                                 into the matching rows of w1)
    #   remaining lanes             : zero (matched by zero rows of w1)
    idx = x_cat_ref[...]                                         # (TB, n_cat) i32
    iota = lax.broadcasted_iota(jnp.int32, (tb, lane), 1)        # (TB, 128)
    oh = iota == idx[:, 0:1]
    for c in range(1, n_cat):
        oh = oh | (iota == idx[:, c:c + 1])
    slab = oh.astype(jnp.bfloat16)

    xc = x_cont_ref[...].astype(jnp.bfloat16)                    # (TB, n_cont)
    for j in range(n_cont):
        slab = jnp.where(iota == vocab + j, xc[:, j:j + 1], slab)

    # ---- layer 1: single bf16 matmul (embeddings + BN-folded continuous) -----
    h = jnp.dot(slab, w1_ref[...], preferred_element_type=jnp.float32)
    h = jnp.maximum(h + b1_ref[...], 0.0).astype(jnp.bfloat16)

    # ---- layer 2 (bn1 folded into w2/b2), ReLU --------------------------------
    h = jnp.dot(h, w2_ref[...], preferred_element_type=jnp.float32)
    h = jnp.maximum(h + b2_ref[...], 0.0).astype(jnp.bfloat16)

    # ---- output layer (bn2 folded into w3/b3), lane-dense 128-wide store -----
    out_ref[...] = (jnp.dot(h, w3_ref[...], preferred_element_type=jnp.float32)
                    + b3_ref[...])


# ----------------------------------------------------------------------------
# Parameter prep: BN folding, embedding fold into w1, bf16 cast, lane padding.
# ----------------------------------------------------------------------------
def fold_params(params, emb_szs, n_cont):
    n_emb = sum(nf for _, nf in emb_szs)
    vocab = sum(ni for ni, _ in emb_szs)
    h1 = params["w1"].shape[1]
    h2 = params["w2"].shape[1]
    out_sz = params["w3"].shape[1]

    # The single-slab layer-1 trick needs the whole (vocab + cont) input to fit
    # in one 128-lane vreg row.
    assert vocab + n_cont <= LANE, "vocab + n_cont must fit in 128 lanes"

    h1_pad = _round_up(h1, LANE)
    h2_pad = _round_up(h2, LANE)
    out_pad = _round_up(out_sz, LANE)

    # Block-diagonal embedding table (vocab, n_emb) + per-column row offsets.
    # Each categorical column owns a disjoint contiguous row range
    # [offset_c, offset_c + ni_c), so the multi-hot OR in the kernel cannot
    # collide.  (Out-of-range indices would silently select a zero row.)
    e_tab = jnp.zeros((vocab, n_emb), jnp.float32)
    offsets = []
    row_off = col_off = 0
    for (ni, nf), tab in zip(emb_szs, params["emb"]):
        e_tab = e_tab.at[row_off:row_off + ni, col_off:col_off + nf].set(tab)
        offsets.append(row_off)
        row_off += ni
        col_off += nf
    offsets = jnp.array(offsets, jnp.int32)

    def bn_fold(bn):  # bn rows: gamma, beta, mean, var
        scale = bn[0] * lax.rsqrt(bn[3] + EPS)
        shift = bn[1] - bn[2] * scale
        return scale, shift

    w1 = params["w1"]

    # bn_cont -> continuous rows of w1; embeddings folded: e_tab @ w1_emb_rows.
    sc, sh = bn_fold(params["bn_cont"])
    w1e_fold = e_tab @ w1[:n_emb]                    # (vocab, h1)
    w1c = w1[n_emb:] * sc[:, None]                   # (n_cont, h1)
    b1 = params["b1"][0] + sh @ w1[n_emb:]           # (h1,)

    w1_full = jnp.zeros((LANE, h1_pad), jnp.float32)
    w1_full = w1_full.at[:vocab, :h1].set(w1e_fold)
    w1_full = w1_full.at[vocab:vocab + n_cont, :h1].set(w1c)

    # bn1 -> w2
    s1, t1 = bn_fold(params["bn1"])
    w2 = params["w2"] * s1[:, None]
    b2 = params["b2"][0] + t1 @ params["w2"]

    # bn2 -> w3
    s2, t2 = bn_fold(params["bn2"])
    w3 = params["w3"] * s2[:, None]
    b3 = params["b3"][0] + t2 @ params["w3"]

    def pad2(a, r, c, dtype):
        out = jnp.zeros((r, c), dtype)
        return out.at[:a.shape[0], :a.shape[1]].set(a.astype(dtype))

    return {
        "vocab": int(vocab),
        "out_sz": int(out_sz),
        "offsets": offsets,
        "w1": w1_full.astype(jnp.bfloat16),                 # (128, h1_pad) bf16
        "b1": pad2(b1[None, :], 1, h1_pad, jnp.float32),
        "w2": pad2(w2, h1_pad, h2_pad, jnp.bfloat16),
        "b2": pad2(b2[None, :], 1, h2_pad, jnp.float32),
        "w3": pad2(w3, h2_pad, out_pad, jnp.bfloat16),      # lane-dense output
        "b3": pad2(b3[None, :], 1, out_pad, jnp.float32),
    }


# ----------------------------------------------------------------------------
# Forward wrapper
# ----------------------------------------------------------------------------
def tabular_forward(x_cat, x_cont, folded, *, block_batch=2048):
    B = x_cat.shape[0]
    n_cat = x_cat.shape[1]
    n_cont = x_cont.shape[1]
    out_sz = folded["out_sz"]
    h1_pad = folded["w1"].shape[1]
    h2_pad = folded["w2"].shape[1]
    out_pad = folded["w3"].shape[1]

    # Offset-adjust categorical indices into the block-diagonal vocabulary.
    x_cat_adj = (x_cat + folded["offsets"][None, :]).astype(jnp.int32)

    # Batch tiling: large tiles (per-step overhead dominates these tiny
    # matmuls), but keep >= 2 grid steps when the batch allows so v7x's two
    # TensorCores both get work under dimension_semantics=("parallel",).
    tb = min(block_batch, _round_up(B, 8))
    if _round_up(B, tb) == tb and B > 8:
        tb = _round_up((B + 1) // 2, 8)
    b_pad = _round_up(B, tb)
    if b_pad != B:
        x_cat_adj = jnp.pad(x_cat_adj, ((0, b_pad - B), (0, 0)))
        x_cont = jnp.pad(x_cont, ((0, b_pad - B), (0, 0)))

    def batch_spec(f):
        return pl.BlockSpec((tb, f), lambda i: (i, 0))

    def const_spec(r, c):
        # Constant index_map -> block is revisited and stays VMEM-resident.
        return pl.BlockSpec((r, c), lambda i: (0, 0))

    out = pl.pallas_call(
        functools.partial(tabular_kernel, vocab=folded["vocab"]),
        out_shape=jax.ShapeDtypeStruct((b_pad, out_pad), jnp.float32),
        grid=(b_pad // tb,),
        in_specs=[
            batch_spec(n_cat),             # x_cat (offset-adjusted)
            batch_spec(n_cont),            # x_cont (raw; BN folded into w1 rows)
            const_spec(LANE, h1_pad),      # w1 (emb fold + BN-folded cont rows)
            const_spec(1, h1_pad),         # b1
            const_spec(h1_pad, h2_pad),    # w2 (bn1-folded)
            const_spec(1, h2_pad),         # b2
            const_spec(h2_pad, out_pad),   # w3 (bn2-folded, lane-padded)
            const_spec(1, out_pad),        # b3
        ],
        out_specs=batch_spec(out_pad),
        compiler_params=pltpu.CompilerParams(
            dimension_semantics=("parallel",),
            vmem_limit_bytes=48 * 1024 * 1024),
    )(x_cat_adj, x_cont, folded["w1"], folded["b1"], folded["w2"],
      folded["b2"], folded["w3"], folded["b3"])
    return out[:B, :out_sz]


# ----------------------------------------------------------------------------
# Pure-JAX reference (unfolded, eval-mode semantics) for verification
# ----------------------------------------------------------------------------
def reference_forward(x_cat, x_cont, params):
    def bn(x, p):
        return (x - p[2]) / jnp.sqrt(p[3] + EPS) * p[0] + p[1]
    embs = [jnp.take(params["emb"][i], x_cat[:, i], axis=0)
            for i in range(len(params["emb"]))]
    x = jnp.concatenate(embs, axis=1)
    xc = bn(x_cont, params["bn_cont"])
    x = jnp.concatenate([x, xc], axis=1)
    x = jnp.maximum(x @ params["w1"] + params["b1"], 0.0)
    x = bn(x, params["bn1"])
    x = jnp.maximum(x @ params["w2"] + params["b2"], 0.0)
    x = bn(x, params["bn2"])
    return x @ params["w3"] + params["b3"]


def init_params(key, emb_szs, n_cont, out_sz, layers):
    n_emb = sum(nf for _, nf in emb_szs)
    n_in = n_emb + n_cont
    h1, h2 = layers

    keys = jax.random.split(key, 16)
    k = iter(keys)

    def bn_params(kk, f):
        g = jax.random.uniform(kk, (1, f), jnp.float32, 0.5, 1.5)
        b = jax.random.normal(jax.random.fold_in(kk, 1), (1, f), jnp.float32) * 0.1
        m = jax.random.normal(jax.random.fold_in(kk, 2), (1, f), jnp.float32) * 0.1
        v = jax.random.uniform(jax.random.fold_in(kk, 3), (1, f), jnp.float32, 0.5, 1.5)
        return jnp.concatenate([g, b, m, v], axis=0)  # (4, f)

    return {
        "emb": [jax.random.normal(next(k), (ni, nf), jnp.float32) * 0.1
                for ni, nf in emb_szs],
        "bn_cont": bn_params(next(k), n_cont),
        "w1": jax.random.normal(next(k), (n_in, h1), jnp.float32) * (1.0 / jnp.sqrt(n_in)),
        "b1": jax.random.normal(next(k), (1, h1), jnp.float32) * 0.01,
        "bn1": bn_params(next(k), h1),
        "w2": jax.random.normal(next(k), (h1, h2), jnp.float32) * (1.0 / jnp.sqrt(h1)),
        "b2": jax.random.normal(next(k), (1, h2), jnp.float32) * 0.01,
        "bn2": bn_params(next(k), h2),
        "w3": jax.random.normal(next(k), (h2, out_sz), jnp.float32) * (1.0 / jnp.sqrt(h2)),
        "b3": jax.random.normal(next(k), (1, out_sz), jnp.float32) * 0.01,
    }


if __name__ == "__main__":
    # NYC taxi tabular setup: Hour=24, AMorPM=2, Weekday=7 categories.
    cat_szs = [24, 2, 7]
    emb_szs = [(s, min(50, (s + 1) // 2)) for s in cat_szs]  # [(24,12),(2,1),(7,4)]
    n_cont = 6
    out_sz = 2
    layers = [64, 32]
    batch = 20   # exercises batch padding + a 2-step grid

    key = jax.random.PRNGKey(0)
    k_par, k_cat, k_cont = jax.random.split(key, 3)

    params = init_params(k_par, emb_szs, n_cont, out_sz, layers)
    folded = fold_params(params, emb_szs, n_cont)

    x_cat = jnp.stack(
        [jax.random.randint(jax.random.fold_in(k_cat, i), (batch,), 0, s)
         for i, s in enumerate(cat_szs)],
        axis=1,
    ).astype(jnp.int32)                                               # (B, 3)
    x_cont = jax.random.normal(k_cont, (batch, n_cont), jnp.float32)  # (B, 6)

    out = jax.block_until_ready(tabular_forward(x_cat, x_cont, folded))
    ref = jax.block_until_ready(reference_forward(x_cat, x_cont, params))

    assert out.shape == (batch, out_sz)
    # Tolerance loosened vs. the f32 version because resident weights /
    # activations are bf16 on the MXU (f32 accumulation).
    assert jnp.allclose(out, ref, atol=5e-2, rtol=5e-2), "Pallas output mismatch vs JAX ref"

    # TODO(synk): training-mode Dropout sampling and BatchNorm running-stat updates
    # are intentionally not implemented (eval-mode forward only).
    print("KERNEL_OK")
</pallas_src>

<mosaic_0001>
module attributes {stable_mosaic.version = 11 : i64} {
  func.func @tabular_kernel(%arg0: i32, %arg1: memref<16x3xi32, #tpu.memory_space<vmem>>, %arg2: memref<16x6xf32, #tpu.memory_space<vmem>>, %arg3: memref<128x128xbf16, #tpu.memory_space<vmem>>, %arg4: memref<1x128xf32, #tpu.memory_space<vmem>>, %arg5: memref<128x128xbf16, #tpu.memory_space<vmem>>, %arg6: memref<1x128xf32, #tpu.memory_space<vmem>>, %arg7: memref<128x128xbf16, #tpu.memory_space<vmem>>, %arg8: memref<1x128xf32, #tpu.memory_space<vmem>>, %arg9: memref<16x128xf32, #tpu.memory_space<vmem>>) attributes {dimension_semantics = [#tpu.dimension_semantics<parallel>], iteration_bounds = array<i64: 2>, scalar_prefetch = 0 : i64, scratch_operands = 0 : i64, tpu.core_type = #tpu.core_type<tc>, window_params = [{transform_indices = @transform_0, window_bounds = array<i64: 16, 3>}, {transform_indices = @transform_1, window_bounds = array<i64: 16, 6>}, {pipeline_mode = #tpu.pipeline_mode<synchronous>, transform_indices = @transform_2, window_bounds = array<i64: 128, 128>}, {pipeline_mode = #tpu.pipeline_mode<synchronous>, transform_indices = @transform_3, window_bounds = array<i64: 1, 128>}, {pipeline_mode = #tpu.pipeline_mode<synchronous>, transform_indices = @transform_4, window_bounds = array<i64: 128, 128>}, {pipeline_mode = #tpu.pipeline_mode<synchronous>, transform_indices = @transform_5, window_bounds = array<i64: 1, 128>}, {pipeline_mode = #tpu.pipeline_mode<synchronous>, transform_indices = @transform_6, window_bounds = array<i64: 128, 128>}, {pipeline_mode = #tpu.pipeline_mode<synchronous>, transform_indices = @transform_7, window_bounds = array<i64: 1, 128>}, {transform_indices = @transform_8, window_bounds = array<i64: 16, 128>}]} {
    %c0 = arith.constant 0 : index
    %c0_0 = arith.constant 0 : index
    %0 = vector.load %arg1[%c0, %c0_0] : memref<16x3xi32, #tpu.memory_space<vmem>>, vector<16x3xi32>
    %1 = tpu.iota {dimensions = array<i32: 1>} : vector<16x128xi32>
    %2 = vector.extract_strided_slice %0 {offsets = [0, 0], sizes = [16, 1], strides = [1, 1]} : vector<16x3xi32> to vector<16x1xi32>
    %3 = vector.broadcast %2 : vector<16x1xi32> to vector<16x128xi32>
    %4 = arith.cmpi eq, %1, %3 : vector<16x128xi32>
    %5 = vector.extract_strided_slice %0 {offsets = [0, 1], sizes = [16, 1], strides = [1, 1]} : vector<16x3xi32> to vector<16x1xi32>
    %6 = vector.broadcast %5 : vector<16x1xi32> to vector<16x128xi32>
    %7 = arith.cmpi eq, %1, %6 : vector<16x128xi32>
    %8 = arith.ori %4, %7 : vector<16x128xi1>
    %9 = vector.extract_strided_slice %0 {offsets = [0, 2], sizes = [16, 1], strides = [1, 1]} : vector<16x3xi32> to vector<16x1xi32>
    %10 = vector.broadcast %9 : vector<16x1xi32> to vector<16x128xi32>
    %11 = arith.cmpi eq, %1, %10 : vector<16x128xi32>
    %12 = arith.ori %8, %11 : vector<16x128xi1>
    %13 = arith.extui %12 : vector<16x128xi1> to vector<16x128xi32>
    %14 = arith.sitofp %13 : vector<16x128xi32> to vector<16x128xf32>
    %15 = arith.truncf %14 : vector<16x128xf32> to vector<16x128xbf16>
    %c0_1 = arith.constant 0 : index
    %c0_2 = arith.constant 0 : index
    %16 = vector.load %arg2[%c0_1, %c0_2] : memref<16x6xf32, #tpu.memory_space<vmem>>, vector<16x6xf32>
    %17 = arith.truncf %16 : vector<16x6xf32> to vector<16x6xbf16>
    %c33_i32 = arith.constant 33 : i32
    %18 = vector.broadcast %c33_i32 : i32 to vector<16x128xi32>
    %19 = arith.cmpi eq, %1, %18 : vector<16x128xi32>
    %20 = vector.extract_strided_slice %17 {offsets = [0, 0], sizes = [16, 1], strides = [1, 1]} : vector<16x6xbf16> to vector<16x1xbf16>
    %21 = vector.shape_cast %20 : vector<16x1xbf16> to vector<16x1xbf16>
    %22 = vector.broadcast %21 : vector<16x1xbf16> to vector<16x128xbf16>
    %23 = arith.select %19, %22, %15 : vector<16x128xi1>, vector<16x128xbf16>
    %c34_i32 = arith.constant 34 : i32
    %24 = vector.broadcast %c34_i32 : i32 to vector<16x128xi32>
    %25 = arith.cmpi eq, %1, %24 : vector<16x128xi32>
    %26 = vector.extract_strided_slice %17 {offsets = [0, 1], sizes = [16, 1], strides = [1, 1]} : vector<16x6xbf16> to vector<16x1xbf16>
    %27 = vector.shape_cast %26 : vector<16x1xbf16> to vector<16x1xbf16>
    %28 = vector.broadcast %27 : vector<16x1xbf16> to vector<16x128xbf16>
    %29 = arith.select %25, %28, %23 : vector<16x128xi1>, vector<16x128xbf16>
    %c35_i32 = arith.constant 35 : i32
    %30 = vector.broadcast %c35_i32 : i32 to vector<16x128xi32>
    %31 = arith.cmpi eq, %1, %30 : vector<16x128xi32>
    %32 = vector.extract_strided_slice %17 {offsets = [0, 2], sizes = [16, 1], strides = [1, 1]} : vector<16x6xbf16> to vector<16x1xbf16>
    %33 = vector.shape_cast %32 : vector<16x1xbf16> to vector<16x1xbf16>
    %34 = vector.broadcast %33 : vector<16x1xbf16> to vector<16x128xbf16>
    %35 = arith.select %31, %34, %29 : vector<16x128xi1>, vector<16x128xbf16>
    %c36_i32 = arith.constant 36 : i32
    %36 = vector.broadcast %c36_i32 : i32 to vector<16x128xi32>
    %37 = arith.cmpi eq, %1, %36 : vector<16x128xi32>
    %38 = vector.extract_strided_slice %17 {offsets = [0, 3], sizes = [16, 1], strides = [1, 1]} : vector<16x6xbf16> to vector<16x1xbf16>
    %39 = vector.shape_cast %38 : vector<16x1xbf16> to vector<16x1xbf16>
    %40 = vector.broadcast %39 : vector<16x1xbf16> to vector<16x128xbf16>
    %41 = arith.select %37, %40, %35 : vector<16x128xi1>, vector<16x128xbf16>
    %c37_i32 = arith.constant 37 : i32
    %42 = vector.broadcast %c37_i32 : i32 to vector<16x128xi32>
    %43 = arith.cmpi eq, %1, %42 : vector<16x128xi32>
    %44 = vector.extract_strided_slice %17 {offsets = [0, 4], sizes = [16, 1], strides = [1, 1]} : vector<16x6xbf16> to vector<16x1xbf16>
    %45 = vector.shape_cast %44 : vector<16x1xbf16> to vector<16x1xbf16>
    %46 = vector.broadcast %45 : vector<16x1xbf16> to vector<16x128xbf16>
    %47 = arith.select %43, %46, %41 : vector<16x128xi1>, vector<16x128xbf16>
    %c38_i32 = arith.constant 38 : i32
    %48 = vector.broadcast %c38_i32 : i32 to vector<16x128xi32>
    %49 = arith.cmpi eq, %1, %48 : vector<16x128xi32>
    %50 = vector.extract_strided_slice %17 {offsets = [0, 5], sizes = [16, 1], strides = [1, 1]} : vector<16x6xbf16> to vector<16x1xbf16>
    %51 = vector.shape_cast %50 : vector<16x1xbf16> to vector<16x1xbf16>
    %52 = vector.broadcast %51 : vector<16x1xbf16> to vector<16x128xbf16>
    %53 = arith.select %49, %52, %47 : vector<16x128xi1>, vector<16x128xbf16>
    %c0_3 = arith.constant 0 : index
    %c0_4 = arith.constant 0 : index
    %54 = vector.load %arg3[%c0_3, %c0_4] : memref<128x128xbf16, #tpu.memory_space<vmem>>, vector<128x128xbf16>
    %cst = arith.constant dense<0.000000e+00> : vector<16x128xf32>
    %55 = tpu.matmul %53, %54, %cst {dimension_numbers = #tpu.dot_dimension_numbers<[1], [0], [0], [1], [0, 0, 1, 1], [], []>} : vector<16x128xbf16>, vector<128x128xbf16>, vector<16x128xf32> -> vector<16x128xf32>
    %c0_5 = arith.constant 0 : index
    %c0_6 = arith.constant 0 : index
    %56 = vector.load %arg4[%c0_5, %c0_6] : memref<1x128xf32, #tpu.memory_space<vmem>>, vector<1x128xf32>
    %57 = vector.broadcast %56 : vector<1x128xf32> to vector<16x128xf32>
    %58 = arith.addf %55, %57 : vector<16x128xf32>
    %cst_7 = arith.constant 0.000000e+00 : f32
    %59 = vector.broadcast %cst_7 : f32 to vector<16x128xf32>
    %60 = arith.maximumf %58, %59 : vector<16x128xf32>
    %61 = arith.truncf %60 : vector<16x128xf32> to vector<16x128xbf16>
    %c0_8 = arith.constant 0 : index
    %c0_9 = arith.constant 0 : index
    %62 = vector.load %arg5[%c0_8, %c0_9] : memref<128x128xbf16, #tpu.memory_space<vmem>>, vector<128x128xbf16>
    %cst_10 = arith.constant dense<0.000000e+00> : vector<16x128xf32>
    %63 = tpu.matmul %61, %62, %cst_10 {dimension_numbers = #tpu.dot_dimension_numbers<[1], [0], [0], [1], [0, 0, 1, 1], [], []>} : vector<16x128xbf16>, vector<128x128xbf16>, vector<16x128xf32> -> vector<16x128xf32>
    %c0_11 = arith.constant 0 : index
    %c0_12 = arith.constant 0 : index
    %64 = vector.load %arg6[%c0_11, %c0_12] : memref<1x128xf32, #tpu.memory_space<vmem>>, vector<1x128xf32>
    %65 = vector.broadcast %64 : vector<1x128xf32> to vector<16x128xf32>
    %66 = arith.addf %63, %65 : vector<16x128xf32>
    %cst_13 = arith.constant 0.000000e+00 : f32
    %67 = vector.broadcast %cst_13 : f32 to vector<16x128xf32>
    %68 = arith.maximumf %66, %67 : vector<16x128xf32>
    %69 = arith.truncf %68 : vector<16x128xf32> to vector<16x128xbf16>
    %c0_14 = arith.constant 0 : index
    %c0_15 = arith.constant 0 : index
    %70 = vector.load %arg7[%c0_14, %c0_15] : memref<128x128xbf16, #tpu.memory_space<vmem>>, vector<128x128xbf16>
    %cst_16 = arith.constant dense<0.000000e+00> : vector<16x128xf32>
    %71 = tpu.matmul %69, %70, %cst_16 {dimension_numbers = #tpu.dot_dimension_numbers<[1], [0], [0], [1], [0, 0, 1, 1], [], []>} : vector<16x128xbf16>, vector<128x128xbf16>, vector<16x128xf32> -> vector<16x128xf32>
    %c0_17 = arith.constant 0 : index
    %c0_18 = arith.constant 0 : index
    %72 = vector.load %arg8[%c0_17, %c0_18] : memref<1x128xf32, #tpu.memory_space<vmem>>, vector<1x128xf32>
    %73 = vector.broadcast %72 : vector<1x128xf32> to vector<16x128xf32>
    %74 = arith.addf %71, %73 : vector<16x128xf32>
    %c0_19 = arith.constant 0 : index
    %c0_20 = arith.constant 0 : index
    %75 = vector.load %arg9[%c0_19, %c0_20] : memref<16x128xf32, #tpu.memory_space<vmem>>, vector<16x128xf32>
    tpu.vector_store %arg9[%c0_19, %c0_20], %74 {strides = array<i32>} : memref<16x128xf32, #tpu.memory_space<vmem>>, vector<16x128xf32>,
    return
  }
  func.func @transform_0(%arg0: i32) -> (i32, i32) {
    %c0_i32 = arith.constant 0 : i32
    %c0_i32_0 = arith.constant 0 : i32
    return %arg0, %c0_i32 : i32, i32
  }
  func.func @transform_1(%arg0: i32) -> (i32, i32) {
    %c0_i32 = arith.constant 0 : i32
    %c0_i32_0 = arith.constant 0 : i32
    return %arg0, %c0_i32 : i32, i32
  }
  func.func @transform_2(%arg0: i32) -> (i32, i32) {
    %c0_i32 = arith.constant 0 : i32
    %c0_i32_0 = arith.constant 0 : i32
    %c0_i32_1 = arith.constant 0 : i32
    return %c0_i32, %c0_i32_0 : i32, i32
  }
  func.func @transform_3(%arg0: i32) -> (i32, i32) {
    %c0_i32 = arith.constant 0 : i32
    %c0_i32_0 = arith.constant 0 : i32
    %c0_i32_1 = arith.constant 0 : i32
    return %c0_i32, %c0_i32_0 : i32, i32
  }
  func.func @transform_4(%arg0: i32) -> (i32, i32) {
    %c0_i32 = arith.constant 0 : i32
    %c0_i32_0 = arith.constant 0 : i32
    %c0_i32_1 = arith.constant 0 : i32
    return %c0_i32, %c0_i32_0 : i32, i32
  }
  func.func @transform_5(%arg0: i32) -> (i32, i32) {
    %c0_i32 = arith.constant 0 : i32
    %c0_i32_0 = arith.constant 0 : i32
    %c0_i32_1 = arith.constant 0 : i32
    return %c0_i32, %c0_i32_0 : i32, i32
  }
  func.func @transform_6(%arg0: i32) -> (i32, i32) {
    %c0_i32 = arith.constant 0 : i32
    %c0_i32_0 = arith.constant 0 : i32
    %c0_i32_1 = arith.constant 0 : i32
    return %c0_i32, %c0_i32_0 : i32, i32
  }
  func.func @transform_7(%arg0: i32) -> (i32, i32) {
    %c0_i32 = arith.constant 0 : i32
    %c0_i32_0 = arith.constant 0 : i32
    %c0_i32_1 = arith.constant 0 : i32
    return %c0_i32, %c0_i32_0 : i32, i32
  }
  func.func @transform_8(%arg0: i32) -> (i32, i32) {
    %c0_i32 = arith.constant 0 : i32
    %c0_i32_0 = arith.constant 0 : i32
    return %arg0, %c0_i32 : i32, i32
  }
}

</mosaic_0001>

<llo_original>
// kernel: tpu_custom_call.1
$region0: #{tpu_custom_call.1}
  #allocation0 [shape = 'u32[]', space=smem, size = 0x4, offset = 0x4, fixed_abs, tag = 'smem constant byte address 0x4 - core index']
  #allocation1 [shape = 'u32[72,128]{1,0:T(1,128)}', space=vmem, size = 0x9000, scoped, tag = 'internal scratch']
  %s0 = inlined_call_operand.vmem [shape: s32[32,3], index: 0, kind: input, shape index: {}]
  %s1 = inlined_call_operand.vmem [shape: f32[32,6], index: 1, kind: input, shape index: {}]
  %s2 = inlined_call_operand.vmem [shape: bf16[128,128], index: 2, kind: input, shape index: {}]
  %s3 = inlined_call_operand.vmem [shape: f32[1,128], index: 3, kind: input, shape index: {}]
  %s4 = inlined_call_operand.hbm [shape: bf16[128,128], index: 4, kind: input, shape index: {}]
  %s5 = inlined_call_operand.vmem [shape: f32[1,128], index: 5, kind: input, shape index: {}]
  %s6 = inlined_call_operand.hbm [shape: bf16[128,128], index: 6, kind: input, shape index: {}]
  %s7 = inlined_call_operand.vmem [shape: f32[1,128], index: 7, kind: input, shape index: {}]
  %s8 = inlined_call_operand.hbm [shape: f32[32,128], index: 8, kind: output, shape index: {}]
  %s9 = sld [smem:[#allocation0]]
  $region73: #{tpu_custom_call.1} parent=0
    _
  %s11 = ssub.s32 1, %s9
  %s12 = scalar_select 0, %s11, %s9
  $region1: #{tpu_custom_call.1} parent=0
    #allocation2 [shape = 'u8[32768]{0}', space=vmem, size = 0x8000, scoped, tag = 'input window, operand 4, single buffered']
    #allocation3 [shape = 's32[2]{0}', space=sflag, size = 0x8, scoped, tag = 'scoped memory for tpu_custom_call.1']
    #allocation4 [shape = 's32[2]{0}', space=sflag, size = 0x8, scoped, tag = 'scoped memory for tpu_custom_call.1']
    #allocation5 [shape = 'u8[32768]{0}', space=vmem, size = 0x8000, scoped, tag = 'input window, operand 6, single buffered']
    #allocation6 [shape = 's32[1]{0}', space=sflag, size = 0x4, scoped, tag = 'scoped memory for tpu_custom_call.1']
    #allocation7 [shape = 'u8[16384]{0}', space=vmem, size = 0x4000, scoped, tag = 'output window, operand 0']
    %13 = vsyncpa [#allocation3], 0
    %14 = vsyncpa [#allocation6], 0
    %15 = vsyncpa [#allocation4], 0
    %s16 = scalar_lea.sflag [#allocation4], 1
    %17 = vsyncpa %s16, 0
    loop: start=0, step=1, limit=4
    $region2: #{tpu_custom_call.1} parent=1 // loop_pre_header
      _
    $region3: #{tpu_custom_call.1} parent=1 // loop_header
      %s19 = sphi 0, %s23
      %p20 = scmp.ge.s32.totalorder %s19, 4
      %s29 = sphi 0, %s31
      %s32 = sphi 0, %s29
      %s33 = sphi 0, %s32
      %s49 = sphi 0, %s33
      %s55 = sphi 0, %s57
      %s58 = sphi 0, %s55
      %s59 = sphi 0, %s58
      %s75 = sphi 0, %s59
      %s79 = sphi 0, %s79
      %s81 = sphi 0, %s79
      %s82 = sphi 0, %s81
      %s96 = sphi 0, %s82
      %s100 = sphi 0, %s100
      %s102 = sphi 0, %s100
      %s103 = sphi 0, %s102
      %s117 = sphi 0, %s103
      %s121 = sphi 0, %s121
      %s123 = sphi 0, %s121
      %s124 = sphi 0, %s123
      %s138 = sphi 0, %s124
      %s142 = sphi 0, %s142
      %s144 = sphi 0, %s142
      %s145 = sphi 0, %s144
      %s159 = sphi 0, %s145
      %s163 = sphi 0, %s163
      %s165 = sphi 0, %s163
      %s166 = sphi 0, %s165
      %s180 = sphi 0, %s166
      %s184 = sphi 0, %s184
      %s186 = sphi 0, %s184
      %s187 = sphi 0, %s186
      %s201 = sphi 0, %s187
      %s207 = sphi 0, %s209
      %s210 = sphi 0, %s207
      %s211 = sphi 0, %s210
      %s227 = sphi 0, %s211
    $region4: #{tpu_custom_call.1} parent=1 // loop_header_branch
      %22 = sbr.rel (%p20) target = $region8
    $region5: #{tpu_custom_call.1} parent=1 // loop_body
      %s24 = ssub.s32 %s19, 1
      %s25 = ssub.s32 %s19, 2
      %s26 = sadd.s32 %s19, 1
      %s27 = ssub.s32 %s19, %s26
      %p28 = scmp.eq.s32.totalorder %s27, 0
      %s30 = sadd.s32 %s29, 1
      %s31 = scalar_select %p28, %s29, %s30
      %p34 = pneg %p28
      %p35 = scmp.eq.s32.totalorder %s19, 1
      %p36 = por %p34, %p35
      %p37 = scmp.ne.s32.totalorder %s29, %s32
      %p38 = scmp.eq.s32.totalorder %s19, 0
      %p39 = por %p37, %p38
      %p40 = scmp.ne.s32.totalorder %s29, %s32
      %p41 = scmp.eq.s32.totalorder %s24, 1
      %p42 = por %p40, %p41
      %p43 = scmp.ne.s32.totalorder %s32, %s33
      %p44 = scmp.eq.s32.totalorder %s24, 0
      %p45 = por %p43, %p44
      %p46 = scmp.ne.s32.totalorder %s32, %s33
      %p47 = scmp.eq.s32.totalorder %s25, 1
      %p48 = por %p46, %p47
      %p50 = scmp.ne.s32.totalorder %s33, %s49
      %p51 = scmp.eq.s32.totalorder %s25, 0
      %p52 = por %p50, %p51
      %s53 = ssub.s32 %s19, %s26
      %p54 = scmp.eq.s32.totalorder %s53, 0
      %s56 = sadd.s32 %s55, 1
      %s57 = scalar_select %p54, %s55, %s56
      %p60 = pneg %p54
      %p61 = scmp.eq.s32.totalorder %s19, 1
      %p62 = por %p60, %p61
      %p63 = scmp.ne.s32.totalorder %s55, %s58
      %p64 = scmp.eq.s32.totalorder %s19, 0
      %p65 = por %p63, %p64
      %p66 = scmp.ne.s32.totalorder %s55, %s58
      %p67 = scmp.eq.s32.totalorder %s24, 1
      %p68 = por %p66, %p67
      %p69 = scmp.ne.s32.totalorder %s58, %s59
      %p70 = scmp.eq.s32.totalorder %s24, 0
      %p71 = por %p69, %p70
      %p72 = scmp.ne.s32.totalorder %s58, %s59
      %p73 = scmp.eq.s32.totalorder %s25, 1
      %p74 = por %p72, %p73
      %p76 = scmp.ne.s32.totalorder %s59, %s75
      %p77 = scmp.eq.s32.totalorder %s25, 0
      %p78 = por %p76, %p77
      %s80 = sadd.s32 %s79, 1
      %p83 = scmp.eq.s32.totalorder %s19, 1
      %p84 = scmp.ne.s32.totalorder %s79, %s81
      %p85 = scmp.eq.s32.totalorder %s19, 0
      %p86 = por %p84, %p85
      %p87 = scmp.ne.s32.totalorder %s79, %s81
      %p88 = scmp.eq.s32.totalorder %s24, 1
      %p89 = por %p87, %p88
      %p90 = scmp.ne.s32.totalorder %s81, %s82
      %p91 = scmp.eq.s32.totalorder %s24, 0
      %p92 = por %p90, %p91
      %p93 = scmp.ne.s32.totalorder %s81, %s82
      %p94 = scmp.eq.s32.totalorder %s25, 1
      %p95 = por %p93, %p94
      %p97 = scmp.ne.s32.totalorder %s82, %s96
      %p98 = scmp.eq.s32.totalorder %s25, 0
      %p99 = por %p97, %p98
      %s101 = sadd.s32 %s100, 1
      %p104 = scmp.eq.s32.totalorder %s19, 1
      %p105 = scmp.ne.s32.totalorder %s100, %s102
      %p106 = scmp.eq.s32.totalorder %s19, 0
      %p107 = por %p105, %p106
      %p108 = scmp.ne.s32.totalorder %s100, %s102
      %p109 = scmp.eq.s32.totalorder %s24, 1
      %p110 = por %p108, %p109
      %p111 = scmp.ne.s32.totalorder %s102, %s103
      %p112 = scmp.eq.s32.totalorder %s24, 0
      %p113 = por %p111, %p112
      %p114 = scmp.ne.s32.totalorder %s102, %s103
      %p115 = scmp.eq.s32.totalorder %s25, 1
      %p116 = por %p114, %p115
      %p118 = scmp.ne.s32.totalorder %s103, %s117
      %p119 = scmp.eq.s32.totalorder %s25, 0
      %p120 = por %p118, %p119
      %s122 = sadd.s32 %s121, 1
      %p125 = scmp.eq.s32.totalorder %s19, 1
      %p126 = scmp.ne.s32.totalorder %s121, %s123
      %p127 = scmp.eq.s32.totalorder %s19, 0
      %p128 = por %p126, %p127
      %p129 = scmp.ne.s32.totalorder %s121, %s123
      %p130 = scmp.eq.s32.totalorder %s24, 1
      %p131 = por %p129, %p130
      %p132 = scmp.ne.s32.totalorder %s123, %s124
      %p133 = scmp.eq.s32.totalorder %s24, 0
      %p134 = por %p132, %p133
      %p135 = scmp.ne.s32.totalorder %s123, %s124
      %p136 = scmp.eq.s32.totalorder %s25, 1
      %p137 = por %p135, %p136
      %p139 = scmp.ne.s32.totalorder %s124, %s138
      %p140 = scmp.eq.s32.totalorder %s25, 0
      %p141 = por %p139, %p140
      %s143 = sadd.s32 %s142, 1
      %p146 = scmp.eq.s32.totalorder %s19, 1
      %p147 = scmp.ne.s32.totalorder %s142, %s144
      %p148 = scmp.eq.s32.totalorder %s19, 0
      %p149 = por %p147, %p148
      %p150 = scmp.ne.s32.totalorder %s142, %s144
      %p151 = scmp.eq.s32.totalorder %s24, 1
      %p152 = por %p150, %p151
      %p153 = scmp.ne.s32.totalorder %s144, %s145
      %p154 = scmp.eq.s32.totalorder %s24, 0
      %p155 = por %p153, %p154
      %p156 = scmp.ne.s32.totalorder %s144, %s145
      %p157 = scmp.eq.s32.totalorder %s25, 1
      %p158 = por %p156, %p157
      %p160 = scmp.ne.s32.totalorder %s145, %s159
      %p161 = scmp.eq.s32.totalorder %s25, 0
      %p162 = por %p160, %p161
      %s164 = sadd.s32 %s163, 1
      %p167 = scmp.eq.s32.totalorder %s19, 1
      %p168 = scmp.ne.s32.totalorder %s163, %s165
      %p169 = scmp.eq.s32.totalorder %s19, 0
      %p170 = por %p168, %p169
      %p171 = scmp.ne.s32.totalorder %s163, %s165
      %p172 = scmp.eq.s32.totalorder %s24, 1
      %p173 = por %p171, %p172
      %p174 = scmp.ne.s32.totalorder %s165, %s166
      %p175 = scmp.eq.s32.totalorder %s24, 0
      %p176 = por %p174, %p175
      %p177 = scmp.ne.s32.totalorder %s165, %s166
      %p178 = scmp.eq.s32.totalorder %s25, 1
      %p179 = por %p177, %p178
      %p181 = scmp.ne.s32.totalorder %s166, %s180
      %p182 = scmp.eq.s32.totalorder %s25, 0
      %p183 = por %p181, %p182
      %s185 = sadd.s32 %s184, 1
      %p188 = scmp.eq.s32.totalorder %s19, 1
      %p189 = scmp.ne.s32.totalorder %s184, %s186
      %p190 = scmp.eq.s32.totalorder %s19, 0
      %p191 = por %p189, %p190
      %p192 = scmp.ne.s32.totalorder %s184, %s186
      %p193 = scmp.eq.s32.totalorder %s24, 1
      %p194 = por %p192, %p193
      %p195 = scmp.ne.s32.totalorder %s186, %s187
      %p196 = scmp.eq.s32.totalorder %s24, 0
      %p197 = por %p195, %p196
      %p198 = scmp.ne.s32.totalorder %s186, %s187
      %p199 = scmp.eq.s32.totalorder %s25, 1
      %p200 = por %p198, %p199
      %p202 = scmp.ne.s32.totalorder %s187, %s201
      %p203 = scmp.eq.s32.totalorder %s25, 0
      %p204 = por %p202, %p203
      %s205 = ssub.s32 %s19, %s26
      %p206 = scmp.eq.s32.totalorder %s205, 0
      %s208 = sadd.s32 %s207, 1
      %s209 = scalar_select %p206, %s207, %s208
      %p212 = pneg %p206
      %p213 = scmp.eq.s32.totalorder %s19, 1
      %p214 = por %p212, %p213
      %p215 = scmp.ne.s32.totalorder %s207, %s210
      %p216 = scmp.eq.s32.totalorder %s19, 0
      %p217 = por %p215, %p216
      %p218 = scmp.ne.s32.totalorder %s207, %s210
      %p219 = scmp.eq.s32.totalorder %s24, 1
      %p220 = por %p218, %p219
      %p221 = scmp.ne.s32.totalorder %s210, %s211
      %p222 = scmp.eq.s32.totalorder %s24, 0
      %p223 = por %p221, %p222
      %p224 = scmp.ne.s32.totalorder %s210, %s211
      %p225 = scmp.eq.s32.totalorder %s25, 1
      %p226 = por %p224, %p225
      %p228 = scmp.ne.s32.totalorder %s211, %s227
      %p229 = scmp.eq.s32.totalorder %s25, 0
      %p230 = por %p228, %p229
      %p231 = scmp.le.s32.totalorder 1, %s19
      %p232 = scmp.lt.s32.totalorder %s19, 3
      %p233 = pnand %p231, %p232
      %p234 = pneg %p233
      // Predicated region
      $region9: #{tpu_custom_call.1} parent=5 // pred_check
        _
      $region10: #{tpu_custom_call.1} parent=5 // pred_check_branch
        %236 = sbr.rel (%p233) target = $region12
      $region11: #{tpu_custom_call.1} parent=5 // pred_region
        %s237 = ssub.s32 %s19, 1
        // Predicated region
        $region13: #{tpu_custom_call.1} parent=11 // pred_check
          %p238 = pneg %p92
        $region14: #{tpu_custom_call.1} parent=11 // pred_check_branch
          %240 = sbr.rel (%p238) target = $region16
        $region15: #{tpu_custom_call.1} parent=11 // pred_region
          _
        $region16: #{tpu_custom_call.1} parent=11 // pred_fallthru
          _
        // Predicated region
        $region17: #{tpu_custom_call.1} parent=11 // pred_check
          %p241 = pneg %p113
        $region18: #{tpu_custom_call.1} parent=11 // pred_check_branch
          %243 = sbr.rel (%p241) target = $region20
        $region19: #{tpu_custom_call.1} parent=11 // pred_region
          _
        $region20: #{tpu_custom_call.1} parent=11 // pred_fallthru
          _
        // Predicated region
        $region21: #{tpu_custom_call.1} parent=11 // pred_check
          %p244 = pneg %p134
        $region22: #{tpu_custom_call.1} parent=11 // pred_check_branch
          %246 = sbr.rel (%p244) target = $region24
        $region23: #{tpu_custom_call.1} parent=11 // pred_region
          %248 = vsyncadd [#allocation3], 0
          %s249 = sshll.u32 %s4, 4
          %s250 = int_to_ptr.hbm [resolvable:$true] %s249
          %s251 = sshll.u32 [#allocation2], 4
          %s252 = int_to_ptr.vmem [resolvable:$true] %s251
          %257 = dma.hbm_to_vmem [thread:$0]  %s250, 1024, %s252, [#allocation3], 64, 64, 4
        $region24: #{tpu_custom_call.1} parent=11 // pred_fallthru
          _
        // Predicated region
        $region25: #{tpu_custom_call.1} parent=11 // pred_check
          %p258 = pneg %p155
        $region26: #{tpu_custom_call.1} parent=11 // pred_check_branch
          %260 = sbr.rel (%p258) target = $region28
        $region27: #{tpu_custom_call.1} parent=11 // pred_region
          _
        $region28: #{tpu_custom_call.1} parent=11 // pred_fallthru
          _
        // Predicated region
        $region29: #{tpu_custom_call.1} parent=11 // pred_check
          %p261 = pneg %p176
        $region30: #{tpu_custom_call.1} parent=11 // pred_check_branch
          %263 = sbr.rel (%p261) target = $region32
        $region31: #{tpu_custom_call.1} parent=11 // pred_region
          %265 = vsyncadd [#allocation6], 0
          %s266 = sshll.u32 %s6, 4
          %s267 = int_to_ptr.hbm [resolvable:$true] %s266
          %s268 = sshll.u32 [#allocation5], 4
          %s269 = int_to_ptr.vmem [resolvable:$true] %s268
          %274 = dma.hbm_to_vmem [thread:$0]  %s267, 1024, %s269, [#allocation6], 64, 64, 4
        $region32: #{tpu_custom_call.1} parent=11 // pred_fallthru
          _
        // Predicated region
        $region33: #{tpu_custom_call.1} parent=11 // pred_check
          %p275 = pneg %p197
        $region34: #{tpu_custom_call.1} parent=11 // pred_check_branch
          %277 = sbr.rel (%p275) target = $region36
        $region35: #{tpu_custom_call.1} parent=11 // pred_region
          _
        $region36: #{tpu_custom_call.1} parent=11 // pred_fallthru
          _
      $region12: #{tpu_custom_call.1} parent=5 // pred_fallthru
        _
      %p278 = scmp.lt.s32.totalorder %s19, 2
      // Predicated region
      $region37: #{tpu_custom_call.1} parent=5 // pred_check
        %p279 = pneg %p278
      $region38: #{tpu_custom_call.1} parent=5 // pred_check_branch
        %281 = sbr.rel (%p279) target = $region40
      $region39: #{tpu_custom_call.1} parent=5 // pred_region
        // Predicated region
        $region41: #{tpu_custom_call.1} parent=39 // pred_check
          %p282 = pneg %p39
        $region42: #{tpu_custom_call.1} parent=39 // pred_check_branch
          %284 = sbr.rel (%p282) target = $region44
        $region43: #{tpu_custom_call.1} parent=39 // pred_region
          %s285 = smul.u32 2, %s19
          %p286 = scmp.lt.s32.totalorder %s285, 3
          %s287 = scalar_select %p286, %s285, 3
          %s288 = smul.addr %s287, 8
          %s289 = scalar_lea.vmem %s0, %s288
          %s290 = smul.u32 2, %s19
        $region44: #{tpu_custom_call.1} parent=39 // pred_fallthru
          _
        // Predicated region
        $region45: #{tpu_custom_call.1} parent=39 // pred_check
          %p291 = pneg %p65
        $region46: #{tpu_custom_call.1} parent=39 // pred_check_branch
          %293 = sbr.rel (%p291) target = $region48
        $region47: #{tpu_custom_call.1} parent=39 // pred_region
          %s294 = smul.u32 2, %s19
          %p295 = scmp.lt.s32.totalorder %s294, 3
          %s296 = scalar_select %p295, %s294, 3
          %s297 = smul.addr %s296, 8
          %s298 = scalar_lea.vmem %s1, %s297
          %s299 = smul.u32 2, %s19
        $region48: #{tpu_custom_call.1} parent=39 // pred_fallthru
          _
      $region40: #{tpu_custom_call.1} parent=5 // pred_fallthru
        _
      %p300 = scmp.le.s32.totalorder 1, %s19
      %p301 = scmp.lt.s32.totalorder %s19, 3
      %p302 = pnand %p300, %p301
      %p303 = pneg %p302
      // Predicated region
      $region49: #{tpu_custom_call.1} parent=5 // pred_check
        _
      $region50: #{tpu_custom_call.1} parent=5 // pred_check_branch
        %305 = sbr.rel (%p302) target = $region52
      $region51: #{tpu_custom_call.1} parent=5 // pred_region
        %s306 = ssub.s32 %s19, 1
        // Predicated region
        $region53: #{tpu_custom_call.1} parent=51 // pred_check
          %p307 = pneg %p134
        $region54: #{tpu_custom_call.1} parent=51 // pred_check_branch
          %309 = sbr.rel (%p307) target = $region56
        $region55: #{tpu_custom_call.1} parent=51 // pred_region
          %311 = dma.done [#allocation3], 1024
        $region56: #{tpu_custom_call.1} parent=51 // pred_fallthru
          _
        // Predicated region
        $region57: #{tpu_custom_call.1} parent=51 // pred_check
          %p312 = pneg %p176
        $region58: #{tpu_custom_call.1} parent=51 // pred_check_branch
          %314 = sbr.rel (%p312) target = $region60
        $region59: #{tpu_custom_call.1} parent=51 // pred_region
          %316 = dma.done [#allocation6], 1024
        $region60: #{tpu_custom_call.1} parent=51 // pred_fallthru
          _
        %s317 = smul.u32 2, %s24
        %p318 = scmp.lt.s32.totalorder %s317, 3
        %s319 = scalar_select %p318, %s317, 3
        %s320 = smul.addr %s319, 8
        %s321 = scalar_lea.vmem %s0, %s320
        %p322 = pneg %p45
        %p323 = pneg %p42
        %s324 = smul.u32 2, %s24
        %p325 = scmp.lt.s32.totalorder %s324, 3
        %s326 = scalar_select %p325, %s324, 3
        %s327 = smul.addr %s326, 8
        %s328 = scalar_lea.vmem %s1, %s327
        %p329 = pneg %p71
        %p330 = pneg %p68
        %p331 = pneg %p92
        %p332 = pneg %p89
        %p333 = pneg %p113
        %p334 = pneg %p110
        %p335 = pneg %p134
        %p336 = pneg %p131
        %p337 = pneg %p155
        %p338 = pneg %p152
        %p339 = pneg %p176
        %p340 = pneg %p173
        %p341 = pneg %p197
        %p342 = pneg %p194
        %p343 = pneg %p223
        %p344 = pneg %p220
        %s345 = sand.u32 %s210, 1
        %s346 = scalar_lea.sflag [#allocation4], %s345
        %s347 = sand.u32 %s210, 1
        %s348 = smul.addr %s347, 16
        %s349 = scalar_lea.vmem [#allocation7], %s348
        %s350 = smul.u32 2, %s24
        %p351 = scmp.lt.s32.totalorder %s350, 3
        %s352 = scalar_select %p351, %s350, 3
        %s353 = smul.addr %s352, 8
        %s354 = scalar_lea.vmem %s0, %s353
        %s355 = smul.u32 2, %s24
        %s356 = smul.u32 2, %s24
        %p357 = scmp.lt.s32.totalorder %s356, 3
        %s358 = scalar_select %p357, %s356, 3
        %s359 = smul.addr %s358, 8
        %s360 = scalar_lea.vmem %s1, %s359
        %s361 = smul.u32 2, %s24
        %s362 = smul.u32 2, %s24
        %v363 = vld [vmem:[%s354] sm:$0xff]
        %v364 = vld [vmem:[%s354 + $0x8] sm:$0xff]
        %v365 = vlaneseq
        %v366 = vand.u32 %v365, 127
        %367 = vset.pattern.permute.xlu0 0
        %368 = vperm.xlu0 %367, %v363
        %v369 = vpop.permute.xlu0 %368
        %370 = vset.pattern.permute.xlu0 0
        %371 = vperm.xlu0 %370, %v364
        %v372 = vpop.permute.xlu0 %371
        %vm373 = vcmp.eq.s32.totalorder %v366, %v369
        %vm374 = vcmp.eq.s32.totalorder %v366, %v372
        %375 = vset.pattern.permute.xlu0 1
        %376 = vperm.xlu0 %375, %v363
        %v377 = vpop.permute.xlu0 %376
        %378 = vset.pattern.permute.xlu0 1
        %379 = vperm.xlu0 %378, %v364
        %v380 = vpop.permute.xlu0 %379
        %vm381 = vcmp.eq.s32.totalorder %v366, %v377
        %vm382 = vcmp.eq.s32.totalorder %v366, %v380
        %vm383 = vmor %vm373, %vm381
        %vm384 = vmor %vm374, %vm382
        %385 = vset.pattern.permute.xlu0 2
        %386 = vperm.xlu0 %385, %v363
        %v387 = vpop.permute.xlu0 %386
        %388 = vset.pattern.permute.xlu0 2
        %389 = vperm.xlu0 %388, %v364
        %v390 = vpop.permute.xlu0 %389
        %vm391 = vcmp.eq.s32.totalorder %v366, %v387
        %vm392 = vcmp.eq.s32.totalorder %v366, %v390
        %vm393 = vmor %vm383, %vm391
        %vm394 = vmor %vm384, %vm392
        %v395 = vsel %vm393, 1, 0
        %v396 = vsel %vm394, 1, 0
        %v397 = vcvt.s32.f32 %v395
        %v398 = vcvt.s32.f32 %v396
        %v399 = vpack.c.bf16 %v397, %v397
        %v400 = vpack.c.bf16 %v398, %v398
        %v401 = vld [vmem:[%s360] sm:$0xff]
        %v402 = vld [vmem:[%s360 + $0x8] sm:$0xff]
        %v403 = vpack.c.bf16 %v401, %v401
        %v404 = vpack.c.bf16 %v402, %v402
        %vm405 = vcmp.eq.s32.totalorder %v366, 33
        %407 = vset.pattern.permute.xlu0 0
        %408 = vperm.xlu0 %407, %v403
        %v409 = vpop.permute.xlu0 %408
        %v412 = vunpack.c.l.s4 839922192
        %v413 = vunpack.c.0.s8 %v412
        %v414 = vperm.slane %v409, %v413
        %416 = vset.pattern.permute.xlu0 0
        %417 = vperm.xlu0 %416, %v404
        %v418 = vpop.permute.xlu0 %417
        %v421 = vunpack.c.l.s4 839922192
        %v422 = vunpack.c.0.s8 %v421
        %v423 = vperm.slane %v418, %v422
        %vm424 = vmpackc.low %vm405, %vm405
        %v425 = vsel %vm424, %v414, %v399
        %v426 = vsel %vm424, %v423, %v400
        %vm427 = vcmp.eq.s32.totalorder %v366, 34
        %428 = vset.pattern.permute.xlu0 1
        %429 = vperm.xlu0 %428, %v403
        %v430 = vpop.permute.xlu0 %429
        %v433 = vunpack.c.l.s4 839922192
        %v434 = vunpack.c.0.s8 %v433
        %v435 = vperm.slane %v430, %v434
        %436 = vset.pattern.permute.xlu0 1
        %437 = vperm.xlu0 %436, %v404
        %v438 = vpop.permute.xlu0 %437
        %v441 = vunpack.c.l.s4 839922192
        %v442 = vunpack.c.0.s8 %v441
        %v443 = vperm.slane %v438, %v442
        %vm444 = vmpackc.low %vm427, %vm427
        %v445 = vsel %vm444, %v435, %v425
        %v446 = vsel %vm444, %v443, %v426
        %vm447 = vcmp.eq.s32.totalorder %v366, 35
        %448 = vset.pattern.permute.xlu0 2
        %449 = vperm.xlu0 %448, %v403
        %v450 = vpop.permute.xlu0 %449
        %v453 = vunpack.c.l.s4 839922192
        %v454 = vunpack.c.0.s8 %v453
        %v455 = vperm.slane %v450, %v454
        %456 = vset.pattern.permute.xlu0 2
        %457 = vperm.xlu0 %456, %v404
        %v458 = vpop.permute.xlu0 %457
        %v461 = vunpack.c.l.s4 839922192
        %v462 = vunpack.c.0.s8 %v461
        %v463 = vperm.slane %v458, %v462
        %vm464 = vmpackc.low %vm447, %vm447
        %v465 = vsel %vm464, %v455, %v445
        %v466 = vsel %vm464, %v463, %v446
        %vm467 = vcmp.eq.s32.totalorder %v366, 36
        %468 = vset.pattern.permute.xlu0 3
        %469 = vperm.xlu0 %468, %v403
        %v470 = vpop.permute.xlu0 %469
        %v473 = vunpack.c.l.s4 839922192
        %v474 = vunpack.c.0.s8 %v473
        %v475 = vperm.slane %v470, %v474
        %476 = vset.pattern.permute.xlu0 3
        %477 = vperm.xlu0 %476, %v404
        %v478 = vpop.permute.xlu0 %477
        %v481 = vunpack.c.l.s4 839922192
        %v482 = vunpack.c.0.s8 %v481
        %v483 = vperm.slane %v478, %v482
        %vm484 = vmpackc.low %vm467, %vm467
        %v485 = vsel %vm484, %v475, %v465
        %v486 = vsel %vm484, %v483, %v466
        %vm487 = vcmp.eq.s32.totalorder %v366, 37
        %488 = vset.pattern.permute.xlu0 4
        %489 = vperm.xlu0 %488, %v403
        %v490 = vpop.permute.xlu0 %489
        %v493 = vunpack.c.l.s4 839922192
        %v494 = vunpack.c.0.s8 %v493
        %v495 = vperm.slane %v490, %v494
        %496 = vset.pattern.permute.xlu0 4
        %497 = vperm.xlu0 %496, %v404
        %v498 = vpop.permute.xlu0 %497
        %v501 = vunpack.c.l.s4 839922192
        %v502 = vunpack.c.0.s8 %v501
        %v503 = vperm.slane %v498, %v502
        %vm504 = vmpackc.low %vm487, %vm487
        %v505 = vsel %vm504, %v495, %v485
        %v506 = vsel %vm504, %v503, %v486
        %vm507 = vcmp.eq.s32.totalorder %v366, 38
        %508 = vset.pattern.permute.xlu0 5
        %509 = vperm.xlu0 %508, %v403
        %v510 = vpop.permute.xlu0 %509
        %v513 = vunpack.c.l.s4 839922192
        %v514 = vunpack.c.0.s8 %v513
        %v515 = vperm.slane %v510, %v514
        %516 = vset.pattern.permute.xlu0 5
        %517 = vperm.xlu0 %516, %v404
        %v518 = vpop.permute.xlu0 %517
        %v521 = vunpack.c.l.s4 839922192
        %v522 = vunpack.c.0.s8 %v521
        %v523 = vperm.slane %v518, %v522
        %vm524 = vmpackc.low %vm507, %vm507
        %v525 = vsel %vm524, %v515, %v505
        %v526 = vsel %vm524, %v523, %v506
        %v527 = vld [vmem:[%s2] sm:$0xf]
        %v528 = vld [vmem:[%s2 + $0x4] sm:$0xf]
        %v529 = vld [vmem:[%s2 + $0x8] sm:$0xf]
        %v530 = vld [vmem:[%s2 + $0xc] sm:$0xf]
        %v531 = vld [vmem:[%s2 + $0x10] sm:$0xf]
        %v532 = vld [vmem:[%s2 + $0x14] sm:$0xf]
        %v533 = vld [vmem:[%s2 + $0x18] sm:$0xf]
        %v534 = vld [vmem:[%s2 + $0x1c] sm:$0xf]
        %v535 = vld [vmem:[%s2 + $0x20] sm:$0xf]
        %v536 = vld [vmem:[%s2 + $0x24] sm:$0xf]
        %v537 = vld [vmem:[%s2 + $0x28] sm:$0xf]
        %v538 = vld [vmem:[%s2 + $0x2c] sm:$0xf]
        %v539 = vld [vmem:[%s2 + $0x30] sm:$0xf]
        %v540 = vld [vmem:[%s2 + $0x34] sm:$0xf]
        %v541 = vld [vmem:[%s2 + $0x38] sm:$0xf]
        %v542 = vld [vmem:[%s2 + $0x3c] sm:$0xf]
        %v543 = vld [vmem:[%s3] sm:$0x1]
        %v545 = vperm.slane %v543, 0
        %v549 = vunpack.c.l.b16 %v525
        %v550 = vunpack.c.l.b16 %v526
        %v551 = vpack.c.b16 %v550, %v549
        %v569 = vunpack.c.l.b16 %v527
        %v570 = vunpack.c.l.b16 %v528
        %v571 = vunpack.c.l.b16 %v529
        %v572 = vunpack.c.l.b16 %v530
        %v573 = vunpack.c.l.b16 %v531
        %v574 = vunpack.c.l.b16 %v532
        %v575 = vunpack.c.l.b16 %v533
        %v576 = vunpack.c.l.b16 %v534
        %v577 = vunpack.c.l.b16 %v535
        %v578 = vunpack.c.l.b16 %v536
        %v579 = vunpack.c.l.b16 %v537
        %v580 = vunpack.c.l.b16 %v538
        %v581 = vunpack.c.l.b16 %v539
        %v582 = vunpack.c.l.b16 %v540
        %v583 = vunpack.c.l.b16 %v541
        %v584 = vunpack.c.l.b16 %v542
        %v585 = vpack.c.b16 %v570, %v569
        %v586 = vpack.c.b16 %v572, %v571
        %v587 = vpack.c.b16 %v574, %v573
        %v588 = vpack.c.b16 %v576, %v575
        %v589 = vpack.c.b16 %v578, %v577
        %v590 = vpack.c.b16 %v580, %v579
        %v591 = vpack.c.b16 %v582, %v581
        %v592 = vpack.c.b16 %v584, %v583
        %601 = vmatpush.bf16.msra.mxu0 %v592
        %602 = vmatpush.bf16.msra.mxu0 %v591
        %603 = vmatpush.bf16.msra.mxu0 %v590
        %604 = vmatpush.bf16.msra.mxu0 %v589
        %605 = vmatpush.bf16.msra.mxu0 %v588
        %606 = vmatpush.bf16.msra.mxu0 %v587
        %607 = vmatpush.bf16.msra.mxu0 %v586
        %608 = vmatpush.bf16.msra.mxu0 %v585
        %609 = vmatmul.bf16.gmra.mxu0 %v551
        %v610 = vpop.f32.mrf.mxu0
        %v611 = vadd.f32 %v545, %v610
        %v612 = vpop.f32.mrf.mxu0
        %v613 = vadd.f32 %v545, %v612
        %614 = vdwg.mxu0
        %v615 = vmax.f32 %v611, 0.0
        %v616 = vmax.f32 %v613, 0.0
        %v617 = vpack.c.bf16 %v616, %v615
        %v618 = vld [vmem:[#allocation2] sm:$0xf]
        %v619 = vld [vmem:[#allocation2 + $0x4] sm:$0xf]
        %v620 = vld [vmem:[#allocation2 + $0x8] sm:$0xf]
        %v621 = vld [vmem:[#allocation2 + $0xc] sm:$0xf]
        %v622 = vld [vmem:[#allocation2 + $0x10] sm:$0xf]
        %v623 = vld [vmem:[#allocation2 + $0x14] sm:$0xf]
        %v624 = vld [vmem:[#allocation2 + $0x18] sm:$0xf]
        %v625 = vld [vmem:[#allocation2 + $0x1c] sm:$0xf]
        %v626 = vld [vmem:[#allocation2 + $0x20] sm:$0xf]
        %v627 = vld [vmem:[#allocation2 + $0x24] sm:$0xf]
        %v628 = vld [vmem:[#allocation2 + $0x28] sm:$0xf]
        %v629 = vld [vmem:[#allocation2 + $0x2c] sm:$0xf]
        %v630 = vld [vmem:[#allocation2 + $0x30] sm:$0xf]
        %v631 = vld [vmem:[#allocation2 + $0x34] sm:$0xf]
        %v632 = vld [vmem:[#allocation2 + $0x38] sm:$0xf]
        %v633 = vld [vmem:[#allocation2 + $0x3c] sm:$0xf]
        %v634 = vld [vmem:[%s5] sm:$0x1]
        %v636 = vperm.slane %v634, 0
        %v654 = vunpack.c.l.b16 %v618
        %v655 = vunpack.c.l.b16 %v619
        %v656 = vunpack.c.l.b16 %v620
        %v657 = vunpack.c.l.b16 %v621
        %v658 = vunpack.c.l.b16 %v622
        %v659 = vunpack.c.l.b16 %v623
        %v660 = vunpack.c.l.b16 %v624
        %v661 = vunpack.c.l.b16 %v625
        %v662 = vunpack.c.l.b16 %v626
        %v663 = vunpack.c.l.b16 %v627
        %v664 = vunpack.c.l.b16 %v628
        %v665 = vunpack.c.l.b16 %v629
        %v666 = vunpack.c.l.b16 %v630
        %v667 = vunpack.c.l.b16 %v631
        %v668 = vunpack.c.l.b16 %v632
        %v669 = vunpack.c.l.b16 %v633
        %v670 = vpack.c.b16 %v655, %v654
        %v671 = vpack.c.b16 %v657, %v656
        %v672 = vpack.c.b16 %v659, %v658
        %v673 = vpack.c.b16 %v661, %v660
        %v674 = vpack.c.b16 %v663, %v662
        %v675 = vpack.c.b16 %v665, %v664
        %v676 = vpack.c.b16 %v667, %v666
        %v677 = vpack.c.b16 %v669, %v668
        %686 = vmatpush.bf16.msra.mxu0 %v677
        %687 = vmatpush.bf16.msra.mxu0 %v676
        %688 = vmatpush.bf16.msra.mxu0 %v675
        %689 = vmatpush.bf16.msra.mxu0 %v674
        %690 = vmatpush.bf16.msra.mxu0 %v673
        %691 = vmatpush.bf16.msra.mxu0 %v672
        %692 = vmatpush.bf16.msra.mxu0 %v671
        %693 = vmatpush.bf16.msra.mxu0 %v670
        %694 = vmatmul.bf16.gmra.mxu0 %v617
        %v695 = vpop.f32.mrf.mxu0
        %v696 = vadd.f32 %v636, %v695
        %v697 = vpop.f32.mrf.mxu0
        %v698 = vadd.f32 %v636, %v697
        %699 = vdwg.mxu0
        %v700 = vmax.f32 %v696, 0.0
        %v701 = vmax.f32 %v698, 0.0
        %v702 = vpack.c.bf16 %v701, %v700
        %v703 = vld [vmem:[#allocation5] sm:$0xf]
        %v704 = vld [vmem:[#allocation5 + $0x4] sm:$0xf]
        %v705 = vld [vmem:[#allocation5 + $0x8] sm:$0xf]
        %v706 = vld [vmem:[#allocation5 + $0xc] sm:$0xf]
        %v707 = vld [vmem:[#allocation5 + $0x10] sm:$0xf]
        %v708 = vld [vmem:[#allocation5 + $0x14] sm:$0xf]
        %v709 = vld [vmem:[#allocation5 + $0x18] sm:$0xf]
        %v710 = vld [vmem:[#allocation5 + $0x1c] sm:$0xf]
        %v711 = vld [vmem:[#allocation5 + $0x20] sm:$0xf]
        %v712 = vld [vmem:[#allocation5 + $0x24] sm:$0xf]
        %v713 = vld [vmem:[#allocation5 + $0x28] sm:$0xf]
        %v714 = vld [vmem:[#allocation5 + $0x2c] sm:$0xf]
        %v715 = vld [vmem:[#allocation5 + $0x30] sm:$0xf]
        %v716 = vld [vmem:[#allocation5 + $0x34] sm:$0xf]
        %v717 = vld [vmem:[#allocation5 + $0x38] sm:$0xf]
        %v718 = vld [vmem:[#allocation5 + $0x3c] sm:$0xf]
        %v719 = vld [vmem:[%s7] sm:$0x1]
        %v721 = vperm.slane %v719, 0
        %v739 = vunpack.c.l.b16 %v703
        %v740 = vunpack.c.l.b16 %v704
        %v741 = vunpack.c.l.b16 %v705
        %v742 = vunpack.c.l.b16 %v706
        %v743 = vunpack.c.l.b16 %v707
        %v744 = vunpack.c.l.b16 %v708
        %v745 = vunpack.c.l.b16 %v709
        %v746 = vunpack.c.l.b16 %v710
        %v747 = vunpack.c.l.b16 %v711
        %v748 = vunpack.c.l.b16 %v712
        %v749 = vunpack.c.l.b16 %v713
        %v750 = vunpack.c.l.b16 %v714
        %v751 = vunpack.c.l.b16 %v715
        %v752 = vunpack.c.l.b16 %v716
        %v753 = vunpack.c.l.b16 %v717
        %v754 = vunpack.c.l.b16 %v718
        %v755 = vpack.c.b16 %v740, %v739
        %v756 = vpack.c.b16 %v742, %v741
        %v757 = vpack.c.b16 %v744, %v743
        %v758 = vpack.c.b16 %v746, %v745
        %v759 = vpack.c.b16 %v748, %v747
        %v760 = vpack.c.b16 %v750, %v749
        %v761 = vpack.c.b16 %v752, %v751
        %v762 = vpack.c.b16 %v754, %v753
        %771 = vmatpush.bf16.msra.mxu0 %v762
        %772 = vmatpush.bf16.msra.mxu0 %v761
        %773 = vmatpush.bf16.msra.mxu0 %v760
        %774 = vmatpush.bf16.msra.mxu0 %v759
        %775 = vmatpush.bf16.msra.mxu0 %v758
        %776 = vmatpush.bf16.msra.mxu0 %v757
        %777 = vmatpush.bf16.msra.mxu0 %v756
        %778 = vmatpush.bf16.msra.mxu0 %v755
        %779 = vmatmul.bf16.gmra.mxu0 %v702
        %v780 = vpop.f32.mrf.mxu0
        %v781 = vadd.f32 %v721, %v780
        %v782 = vpop.f32.mrf.mxu0
        %v783 = vadd.f32 %v721, %v782
        %784 = vdwg.mxu0
        %785 = vst [vmem:[%s349] sm:$0xff] %v781
        %786 = vst [vmem:[%s349 + $0x8] sm:$0xff] %v783
        %s787 = sand.u32 %s210, 1
        %s788 = scalar_lea.sflag [#allocation4], %s787
        %s789 = sand.u32 %s210, 1
        %s790 = smul.addr %s789, 16
        %s791 = scalar_lea.vmem [#allocation7], %s790
        // Predicated region
        $region61: #{tpu_custom_call.1} parent=51 // pred_check
          %p792 = pneg %p220
        $region62: #{tpu_custom_call.1} parent=51 // pred_check_branch
          %794 = sbr.rel (%p792) target = $region64
        $region63: #{tpu_custom_call.1} parent=51 // pred_region
          %s795 = smul.u32 2, %s24
          %797 = vsyncadd %s788, 0
          %s798 = smul.addr %s795, 8
          %s799 = scalar_lea.hbm %s8, %s798
          %s800 = sshll.u32 %s791, 4
          %s801 = int_to_ptr.vmem [resolvable:$true] %s800
          %s802 = sshll.u32 %s799, 4
          %s803 = int_to_ptr.hbm [resolvable:$true] %s802
          %808 = dma.vmem_to_hbm [thread:$0]  %s801, 256, %s803, %s788, 128, 128, 8
        $region64: #{tpu_custom_call.1} parent=51 // pred_fallthru
          _
      $region52: #{tpu_custom_call.1} parent=5 // pred_fallthru
        _
      %p809 = scmp.le.s32.totalorder 2, %s19
      // Predicated region
      $region65: #{tpu_custom_call.1} parent=5 // pred_check
        %p810 = pneg %p809
      $region66: #{tpu_custom_call.1} parent=5 // pred_check_branch
        %812 = sbr.rel (%p810) target = $region68
      $region67: #{tpu_custom_call.1} parent=5 // pred_region
        %s813 = ssub.s32 %s19, 2
        // Predicated region
        $region69: #{tpu_custom_call.1} parent=67 // pred_check
          %p814 = pneg %p226
        $region70: #{tpu_custom_call.1} parent=67 // pred_check_branch
          %816 = sbr.rel (%p814) target = $region72
        $region71: #{tpu_custom_call.1} parent=67 // pred_region
          %s817 = sand.u32 %s211, 1
          %s818 = scalar_lea.sflag [#allocation4], %s817
          %s819 = sand.u32 %s211, 1
          %s820 = smul.addr %s819, 16
          %s821 = scalar_lea.vmem [#allocation7], %s820
          %823 = dma.done %s818, 256
        $region72: #{tpu_custom_call.1} parent=67 // pred_fallthru
          _
      $region68: #{tpu_custom_call.1} parent=5 // pred_fallthru
        _
    $region6: #{tpu_custom_call.1} parent=1 // loop_footer
      %s23 = sadd.s32 1, %s19
    $region7: #{tpu_custom_call.1} parent=1 // loop_footer_branch
      %18 = sbr.rel target = $region3
    $region8: #{tpu_custom_call.1} parent=1 // loop_exit
      _
    %824 = vsyncpa [#allocation3], 1
    %s825 = scalar_lea.sflag [#allocation3], 1
    %826 = vsyncpa %s825, 1
    %827 = vsyncpa [#allocation6], 1
    %828 = vsyncpa [#allocation4], 1
    %s829 = scalar_lea.sflag [#allocation4], 1
    %830 = vsyncpa %s829, 1

</llo_original>
